<compile_context>
chip_gen: v7x
topology: tpu7x:2x2x1
jax: 0.10.0
libtpu: 0.0.40
codegen_flags: <defaults>
</compile_context>

<pallas_src>
import functools

import jax
import jax.numpy as jnp
import numpy as np
from jax.experimental import pallas as pl
from jax.experimental.pallas import tpu as pltpu


# MXU input dtype.  Accumulation is always f32; VPU/EUP math (LN, softmax
# statistics, GELU) is always f32.
COMPUTE_DTYPE = jnp.bfloat16


# --------------------------- tiling / vmem helpers --------------------------


def _pick_tile(dim, pref, align):
    """Choose a block size for `dim`: full dim if small, else an aligned divisor."""
    if dim <= pref:
        return dim                      # block == full extent: always legal
    if dim % pref == 0:
        return pref
    for cand in range(pref, align - 1, -align):
        if dim % cand == 0:
            return cand
    return dim                          # fallback: full extent


def _vmem_limit_bytes():
    """Generation-aware VMEM budget: ~3/4 of physical capacity, fallback 48 MiB."""
    try:
        cap = int(pltpu.get_tpu_info().vmem_capacity_bytes)
        return max(32 << 20, (cap * 3) // 4)
    except Exception:  # older jax / non-TPU tracing environments
        return 48 << 20


_VMEM_LIMIT = _vmem_limit_bytes()


# ----------------------------- standalone LayerNorm -------------------------
# Only used once per forward (the very first pre-attention LN); all other LNs
# are fused as epilogues of the preceding residual matmul.


def _layernorm_kernel(x_ref, g_ref, b_ref, o_ref):
    x = x_ref[...].astype(jnp.float32)
    mu = jnp.mean(x, axis=-1, keepdims=True)
    var = jnp.mean((x - mu) ** 2, axis=-1, keepdims=True)
    y = (x - mu) * jax.lax.rsqrt(var + 1e-5)
    y = y * g_ref[...].astype(jnp.float32) + b_ref[...].astype(jnp.float32)
    o_ref[...] = y.astype(o_ref.dtype)


def layernorm(x, gamma, beta, *, tm=512):
    M, D = x.shape
    bm = _pick_tile(M, tm, 8)
    return pl.pallas_call(
        _layernorm_kernel,
        out_shape=jax.ShapeDtypeStruct((M, D), x.dtype),
        grid=(M // bm,),
        in_specs=[
            pl.BlockSpec((bm, D), lambda i: (i, 0)),
            pl.BlockSpec((1, D), lambda i: (0, 0)),
            pl.BlockSpec((1, D), lambda i: (0, 0)),
        ],
        out_specs=pl.BlockSpec((bm, D), lambda i: (i, 0)),
        compiler_params=pltpu.CompilerParams(
            dimension_semantics=("parallel",),
            vmem_limit_bytes=_VMEM_LIMIT,
        ),
    )(x, gamma, beta)


# ------------------- fused matmul (+bias, gelu, residual, LN-out) -----------


def _make_fused_linear_kernel(activation, has_res, has_ln_out):
    def kernel(*refs):
        i = 0
        x_ref = refs[i]; i += 1
        w_ref = refs[i]; i += 1
        b_ref = refs[i]; i += 1
        r_ref = None
        g_ref = bb_ref = None
        if has_res:
            r_ref = refs[i]; i += 1
        if has_ln_out:
            g_ref = refs[i]; i += 1
            bb_ref = refs[i]; i += 1
        o_ref = refs[i]; i += 1
        oln_ref = None
        if has_ln_out:
            oln_ref = refs[i]; i += 1
        acc_ref = refs[i]

        k_idx = pl.program_id(2)

        @pl.when(k_idx == 0)
        def _init():
            acc_ref[...] = jnp.zeros_like(acc_ref)

        # bf16 MXU inputs, f32 accumulation.
        acc_ref[...] += jnp.dot(
            x_ref[...].astype(COMPUTE_DTYPE),
            w_ref[...].astype(COMPUTE_DTYPE),
            preferred_element_type=jnp.float32,
        )

        @pl.when(k_idx == pl.num_programs(2) - 1)
        def _finalize():
            y = acc_ref[...] + b_ref[...].astype(jnp.float32)
            if activation == "gelu":
                y = jax.nn.gelu(y)
            if has_res:
                y = y + r_ref[...].astype(jnp.float32)
            o_ref[...] = y.astype(o_ref.dtype)
            if has_ln_out:
                # LayerNorm epilogue over the (full-N) output row.
                mu = jnp.mean(y, axis=-1, keepdims=True)
                var = jnp.mean((y - mu) ** 2, axis=-1, keepdims=True)
                yn = (y - mu) * jax.lax.rsqrt(var + 1e-5)
                yn = yn * g_ref[...].astype(jnp.float32) + bb_ref[...].astype(jnp.float32)
                oln_ref[...] = yn.astype(oln_ref.dtype)

    return kernel


def fused_linear(x, w, b, *, residual=None, ln_out=None, activation=None,
                 tm=512, tn=1024, tk=512):
    """y = [gelu](x @ w + b) [+ residual].

    If `ln_out=(gamma, beta)` is given, additionally returns LayerNorm(y) as a
    second output (requires the output tile to span the full N so the LN row
    statistics are available).  x:[M,K] w:[K,N] b:[1,N].
    """
    M, K = x.shape
    N = w.shape[1]
    has_res = residual is not None
    has_ln_out = ln_out is not None

    bm = _pick_tile(M, tm, 16)                                 # bf16 sublane packing
    bn = N if has_ln_out else _pick_tile(N, tn, 256)           # LN epilogue needs full N
    bk = _pick_tile(K, tk, 256)
    grid = (M // bm, N // bn, K // bk)

    in_specs = [
        pl.BlockSpec((bm, bk), lambda i, j, k: (i, k)),
        pl.BlockSpec((bk, bn), lambda i, j, k: (k, j)),
        pl.BlockSpec((1, bn), lambda i, j, k: (0, j)),
    ]
    args = [x, w, b]
    if has_res:
        in_specs.append(pl.BlockSpec((bm, bn), lambda i, j, k: (i, j)))
        args.append(residual)
    if has_ln_out:
        in_specs += [
            pl.BlockSpec((1, bn), lambda i, j, k: (0, j)),
            pl.BlockSpec((1, bn), lambda i, j, k: (0, j)),
        ]
        args += [ln_out[0], ln_out[1]]

    out_spec = pl.BlockSpec((bm, bn), lambda i, j, k: (i, j))
    if has_ln_out:
        out_shape = (jax.ShapeDtypeStruct((M, N), x.dtype),
                     jax.ShapeDtypeStruct((M, N), x.dtype))
        out_specs = (out_spec, pl.BlockSpec((bm, bn), lambda i, j, k: (i, j)))
    else:
        out_shape = jax.ShapeDtypeStruct((M, N), x.dtype)
        out_specs = out_spec

    return pl.pallas_call(
        _make_fused_linear_kernel(activation, has_res, has_ln_out),
        out_shape=out_shape,
        grid=grid,
        in_specs=in_specs,
        out_specs=out_specs,
        scratch_shapes=[pltpu.VMEM((bm, bn), jnp.float32)],
        compiler_params=pltpu.CompilerParams(
            dimension_semantics=("parallel", "parallel", "arbitrary"),
            vmem_limit_bytes=_VMEM_LIMIT,
        ),
    )(*args)


# ------------------------- flash-style causal attention ---------------------


def _flash_attn_kernel(q_ref, k_ref, v_ref, mask_ref, o_ref, m_sc, l_sc, acc_sc,
                       *, scale, bq, bk):
    ki = pl.program_id(2)
    q_off = pl.program_id(1) * bq
    k_off = ki * bk

    @pl.when(ki == 0)
    def _init():
        m_sc[...] = jnp.full(m_sc.shape, -jnp.inf, jnp.float32)
        l_sc[...] = jnp.zeros(l_sc.shape, jnp.float32)
        acc_sc[...] = jnp.zeros(acc_sc.shape, jnp.float32)

    # Skip KV blocks that lie entirely above the causal diagonal (~2x work).
    @pl.when(k_off <= q_off + bq - 1)
    def _compute():
        # Fold scale into q ([Hb,bq,Dh] multiply, not [Hb,bq,bk]); bf16 MXU.
        q = (q_ref[...].astype(jnp.float32) * scale).astype(COMPUTE_DTYPE)
        k = k_ref[...].astype(COMPUTE_DTYPE)
        s = jax.lax.dot_general(
            q, k, (((2,), (2,)), ((0,), (0,))),
            preferred_element_type=jnp.float32)                      # [Hb,bq,bk]

        # 2-D causal iotas broadcast over heads; key-padding mask hoisted.
        row = jax.lax.broadcasted_iota(jnp.int32, (bq, bk), 0) + q_off
        col = jax.lax.broadcasted_iota(jnp.int32, (bq, bk), 1) + k_off
        key_ok = mask_ref[...].astype(jnp.float32) > 0.5             # [1,bk]
        valid = jnp.logical_and(col <= row, key_ok)[None]            # [1,bq,bk]
        s = jnp.where(valid, s, -1e30)

        # online softmax update (f32 stats).
        m_prev = m_sc[...]
        m_new = jnp.maximum(m_prev, jnp.max(s, axis=-1, keepdims=True))
        alpha = jnp.exp(m_prev - m_new)
        p = jnp.exp(s - m_new)
        l_sc[...] = alpha * l_sc[...] + jnp.sum(p, axis=-1, keepdims=True)
        acc_sc[...] = alpha * acc_sc[...] + jax.lax.dot_general(
            p.astype(COMPUTE_DTYPE), v_ref[...].astype(COMPUTE_DTYPE),
            (((2,), (1,)), ((0,), (0,))),
            preferred_element_type=jnp.float32)
        m_sc[...] = m_new

    @pl.when(ki == pl.num_programs(2) - 1)
    def _finalize():
        inv_l = pl.reciprocal(l_sc[...], approx=True)
        o_ref[...] = (acc_sc[...] * inv_l).astype(o_ref.dtype)


def flash_attention(q, k, v, attn_mask, num_heads, *, tq=128, tkv=256):
    """q,k,v: [B*H, S, Dh]; attn_mask: [B, S] (1 = keep, 0 = pad)."""
    BH, S, Dh = q.shape
    H = num_heads
    Hb = H if H <= 8 else max(d for d in (8, 4, 2, 1) if H % d == 0)
    assert H % Hb == 0 and BH % Hb == 0, "head block must not span a batch boundary"
    bq = _pick_tile(S, tq, 128)
    bk = _pick_tile(S, tkv, 128)
    scale = 1.0 / float(np.sqrt(Dh))
    grid = (BH // Hb, S // bq, S // bk)

    kernel = functools.partial(_flash_attn_kernel, scale=scale, bq=bq, bk=bk)

    return pl.pallas_call(
        kernel,
        out_shape=jax.ShapeDtypeStruct((BH, S, Dh), q.dtype),
        grid=grid,
        in_specs=[
            pl.BlockSpec((Hb, bq, Dh), lambda g, qi, ki: (g, qi, 0)),
            pl.BlockSpec((Hb, bk, Dh), lambda g, qi, ki: (g, ki, 0)),
            pl.BlockSpec((Hb, bk, Dh), lambda g, qi, ki: (g, ki, 0)),
            pl.BlockSpec((1, bk), lambda g, qi, ki: ((g * Hb) // H, ki)),
        ],
        out_specs=pl.BlockSpec((Hb, bq, Dh), lambda g, qi, ki: (g, qi, 0)),
        scratch_shapes=[
            pltpu.VMEM((Hb, bq, 1), jnp.float32),    # running max
            pltpu.VMEM((Hb, bq, 1), jnp.float32),    # running sum
            pltpu.VMEM((Hb, bq, Dh), jnp.float32),   # output accumulator
        ],
        compiler_params=pltpu.CompilerParams(
            dimension_semantics=("parallel", "parallel", "arbitrary"),
            vmem_limit_bytes=_VMEM_LIMIT,
        ),
    )(q, k, v, attn_mask)


# ------------------------- model definition (glue) --------------------------


def init_params(key, vocab, d_model, n_heads, n_layers, d_mlp, max_pos):
    ks = jax.random.split(key, 4 + n_layers)
    std = 0.02
    params = {
        "wte": std * jax.random.normal(ks[0], (vocab, d_model), jnp.float32),
        "wpe": std * jax.random.normal(ks[1], (max_pos, d_model), jnp.float32),
        "lnf_g": jnp.ones((1, d_model), jnp.float32),
        "lnf_b": jnp.zeros((1, d_model), jnp.float32),
        "lm_head_w": std * jax.random.normal(ks[2], (d_model, vocab), jnp.float32),
        "lm_head_b": jnp.zeros((1, vocab), jnp.float32),
        "layers": [],
    }
    for li in range(n_layers):
        lk = jax.random.split(ks[4 + li], 4)
        params["layers"].append(
            {
                "ln1_g": jnp.ones((1, d_model), jnp.float32),
                "ln1_b": jnp.zeros((1, d_model), jnp.float32),
                "w_qkv": std * jax.random.normal(lk[0], (d_model, 3 * d_model), jnp.float32),
                "b_qkv": jnp.zeros((1, 3 * d_model), jnp.float32),
                "w_o": std * jax.random.normal(lk[1], (d_model, d_model), jnp.float32),
                "b_o": jnp.zeros((1, d_model), jnp.float32),
                "ln2_g": jnp.ones((1, d_model), jnp.float32),
                "ln2_b": jnp.zeros((1, d_model), jnp.float32),
                "w_fc": std * jax.random.normal(lk[2], (d_model, d_mlp), jnp.float32),
                "b_fc": jnp.zeros((1, d_mlp), jnp.float32),
                "w_proj": std * jax.random.normal(lk[3], (d_mlp, d_model), jnp.float32),
                "b_proj": jnp.zeros((1, d_model), jnp.float32),
            }
        )
    return params


def auto_model_merged_forward(params, input_ids, attention_mask, n_heads):
    """Pallas-backed forward: returns (logits, past_key_values)."""
    B, S = input_ids.shape
    D = params["wte"].shape[1]
    H = n_heads
    Dh = D // H
    n_layers = len(params["layers"])

    h = params["wte"][input_ids] + params["wpe"][jnp.arange(S)][None, :, :]  # [B,S,D]
    x = h.reshape(B * S, D)                                                  # residual stream
    mask_f = attention_mask.astype(jnp.float32)                              # [B,S]

    # First pre-attention LayerNorm (layer 0) via a standalone kernel; every
    # subsequent LN is fused as an epilogue of the preceding residual matmul,
    # so all matmuls below tile K normally.
    n_in = layernorm(x, params["layers"][0]["ln1_g"], params["layers"][0]["ln1_b"])

    past_key_values = []
    for li, lp in enumerate(params["layers"]):
        # QKV projection (+bias), plain K-tiled matmul on the pre-LN'd input.
        qkv = fused_linear(n_in, lp["w_qkv"], lp["b_qkv"])                    # [B*S, 3D]
        qkv = qkv.reshape(B, S, 3, H, Dh)
        # TODO(synk): fold these head-split / merge transposes into BlockSpec
        #             indexing of the qkv slab (lane-dense [B,S,H*Dh] output).
        q = qkv[:, :, 0].transpose(0, 2, 1, 3).reshape(B * H, S, Dh)
        k = qkv[:, :, 1].transpose(0, 2, 1, 3).reshape(B * H, S, Dh)
        v = qkv[:, :, 2].transpose(0, 2, 1, 3).reshape(B * H, S, Dh)
        past_key_values.append((k.reshape(B, H, S, Dh), v.reshape(B, H, S, Dh)))

        attn = flash_attention(q, k, v, mask_f, H)                            # [B*H,S,Dh]
        attn = attn.reshape(B, H, S, Dh).transpose(0, 2, 1, 3).reshape(B * S, D)

        # output projection + residual, with ln2 fused as an epilogue.
        x, n_mlp = fused_linear(attn, lp["w_o"], lp["b_o"], residual=x,
                                ln_out=(lp["ln2_g"], lp["ln2_b"]))

        # MLP up-projection + GELU.
        m1 = fused_linear(n_mlp, lp["w_fc"], lp["b_fc"], activation="gelu")   # [B*S, d_mlp]

        # MLP down-projection + residual, with the NEXT LayerNorm (next layer's
        # ln1, or the final LN) fused as an epilogue.
        if li + 1 < n_layers:
            nxt_ln = (params["layers"][li + 1]["ln1_g"], params["layers"][li + 1]["ln1_b"])
        else:
            nxt_ln = (params["lnf_g"], params["lnf_b"])
        x, n_in = fused_linear(m1, lp["w_proj"], lp["b_proj"], residual=x, ln_out=nxt_ln)

    # lm_head: plain K-tiled matmul on the already-final-LN'd hidden state
    # (no per-N-tile LN recompute, no full-K prologue).
    logits = fused_linear(n_in, params["lm_head_w"], params["lm_head_b"])
    return logits.reshape(B, S, -1), tuple(past_key_values)


# ----------------------- pure-JAX reference (check) -------------------------


def reference_forward(params, input_ids, attention_mask, n_heads):
    """Same math in plain JAX.  Matmul inputs cast to bf16 with f32 accumulation
    to match the kernels' mixed precision (LN / softmax / gelu stay f32)."""
    def bdot(a, b):
        return jnp.dot(a.astype(COMPUTE_DTYPE), b.astype(COMPUTE_DTYPE),
                       preferred_element_type=jnp.float32)

    def ln(x, g, b):
        mu = x.mean(-1, keepdims=True)
        var = ((x - mu) ** 2).mean(-1, keepdims=True)
        return (x - mu) * jax.lax.rsqrt(var + 1e-5) * g + b

    B, S = input_ids.shape
    D = params["wte"].shape[1]
    H = n_heads
    Dh = D // H
    scale = 1.0 / float(np.sqrt(Dh))

    h = params["wte"][input_ids] + params["wpe"][jnp.arange(S)][None, :, :]
    mask_f = attention_mask.astype(jnp.float32)
    for lp in params["layers"]:
        n = ln(h, lp["ln1_g"][0], lp["ln1_b"][0])
        qkv = bdot(n.reshape(B * S, D), lp["w_qkv"]).reshape(B, S, -1) + lp["b_qkv"][0]
        qkv = qkv.reshape(B, S, 3, H, Dh)
        q = qkv[:, :, 0].transpose(0, 2, 1, 3)
        k = qkv[:, :, 1].transpose(0, 2, 1, 3)
        v = qkv[:, :, 2].transpose(0, 2, 1, 3)
        s = jnp.einsum("bhqd,bhkd->bhqk",
                       (q * scale).astype(COMPUTE_DTYPE), k.astype(COMPUTE_DTYPE),
                       preferred_element_type=jnp.float32)
        causal = jnp.tril(jnp.ones((S, S), bool))
        valid = causal[None, None] & (mask_f[:, None, None, :] > 0.5)
        s = jnp.where(valid, s, -1e30)
        p = jax.nn.softmax(s, axis=-1)
        a = jnp.einsum("bhqk,bhkd->bhqd",
                       p.astype(COMPUTE_DTYPE), v.astype(COMPUTE_DTYPE),
                       preferred_element_type=jnp.float32)
        a = a.transpose(0, 2, 1, 3).reshape(B, S, D)
        h = (bdot(a.reshape(B * S, D), lp["w_o"]).reshape(B, S, D) + lp["b_o"][0]) + h
        n2 = ln(h, lp["ln2_g"][0], lp["ln2_b"][0])
        m1 = jax.nn.gelu(bdot(n2.reshape(B * S, D), lp["w_fc"]).reshape(B, S, -1)
                         + lp["b_fc"][0])
        h = (bdot(m1.reshape(B * S, -1), lp["w_proj"]).reshape(B, S, D)
             + lp["b_proj"][0]) + h
    hf = ln(h, params["lnf_g"][0], params["lnf_b"][0])
    return (bdot(hf.reshape(B * S, D), params["lm_head_w"]).reshape(B, S, -1)
            + params["lm_head_b"][0])


# --------------------------------- main -------------------------------------

if __name__ == "__main__":
    VOCAB, D_MODEL, N_HEADS, N_LAYERS, D_MLP = 64, 32, 4, 2, 64
    B, S = 2, 8

    key = jax.random.PRNGKey(0)
    pkey, ikey = jax.random.split(key)
    params = init_params(pkey, VOCAB, D_MODEL, N_HEADS, N_LAYERS, D_MLP, max_pos=S)

    input_ids = jax.random.randint(ikey, (B, S), 0, VOCAB, dtype=jnp.int32)
    attention_mask = jnp.array(
        [[1, 1, 1, 1, 1, 1, 1, 1],
         [1, 1, 1, 1, 1, 1, 0, 0]], dtype=jnp.int32
    )

    logits, past_kv = auto_model_merged_forward(params, input_ids, attention_mask, N_HEADS)
    logits = jax.block_until_ready(logits)

    ref = reference_forward(params, input_ids, attention_mask, N_HEADS)
    # Tolerance covers: online vs batch softmax accumulation order, the EUP
    # approximate reciprocal in the softmax denominator, and bf16 rounding of
    # the (un)normalized attention probabilities.
    np.testing.assert_allclose(np.asarray(logits), np.asarray(ref), atol=2e-2, rtol=2e-2)

    assert logits.shape == (B, S, VOCAB)
    assert len(past_kv) == N_LAYERS and past_kv[0][0].shape == (B, N_HEADS, S, D_MODEL // N_HEADS)
    print("KERNEL_OK")
</pallas_src>

<mosaic_0001>
module attributes {stable_mosaic.version = 11 : i64} {
  func.func @_layernorm_kernel(%arg0: i32, %arg1: memref<16x32xf32, #tpu.memory_space<vmem>>, %arg2: memref<1x32xf32, #tpu.memory_space<vmem>>, %arg3: memref<1x32xf32, #tpu.memory_space<vmem>>, %arg4: memref<16x32xf32, #tpu.memory_space<vmem>>) attributes {dimension_semantics = [#tpu.dimension_semantics<parallel>], iteration_bounds = array<i64: 1>, scalar_prefetch = 0 : i64, scratch_operands = 0 : i64, tpu.core_type = #tpu.core_type<tc>, window_params = [{transform_indices = @transform_0, window_bounds = array<i64: 16, 32>}, {pipeline_mode = #tpu.pipeline_mode<synchronous>, transform_indices = @transform_1, window_bounds = array<i64: 1, 32>}, {pipeline_mode = #tpu.pipeline_mode<synchronous>, transform_indices = @transform_2, window_bounds = array<i64: 1, 32>}, {transform_indices = @transform_3, window_bounds = array<i64: 16, 32>}]} {
    %c0 = arith.constant 0 : index
    %c0_0 = arith.constant 0 : index
    %0 = vector.load %arg1[%c0, %c0_0] : memref<16x32xf32, #tpu.memory_space<vmem>>, vector<16x32xf32>
    %cst = arith.constant dense<0.000000e+00> : vector<16xf32>
    %1 = vector.multi_reduction <add>, %0, %cst [1] : vector<16x32xf32> to vector<16xf32>
    %2 = vector.shape_cast %1 : vector<16xf32> to vector<16x1xf32>
    %cst_1 = arith.constant 3.200000e+01 : f32
    %3 = vector.broadcast %cst_1 : f32 to vector<16x1xf32>
    %4 = arith.divf %2, %3 : vector<16x1xf32>
    %5 = vector.broadcast %4 : vector<16x1xf32> to vector<16x32xf32>
    %6 = arith.subf %0, %5 : vector<16x32xf32>
    %7 = arith.mulf %6, %6 : vector<16x32xf32>
    %cst_2 = arith.constant dense<0.000000e+00> : vector<16xf32>
    %8 = vector.multi_reduction <add>, %7, %cst_2 [1] : vector<16x32xf32> to vector<16xf32>
    %9 = vector.shape_cast %8 : vector<16xf32> to vector<16x1xf32>
    %cst_3 = arith.constant 3.200000e+01 : f32
    %10 = vector.broadcast %cst_3 : f32 to vector<16x1xf32>
    %11 = arith.divf %9, %10 : vector<16x1xf32>
    %12 = vector.broadcast %4 : vector<16x1xf32> to vector<16x32xf32>
    %13 = arith.subf %0, %12 : vector<16x32xf32>
    %cst_4 = arith.constant 9.99999974E-6 : f32
    %14 = vector.broadcast %cst_4 : f32 to vector<16x1xf32>
    %15 = arith.addf %11, %14 : vector<16x1xf32>
    %16 = math.rsqrt %15 : vector<16x1xf32>
    %17 = vector.broadcast %16 : vector<16x1xf32> to vector<16x32xf32>
    %18 = arith.mulf %13, %17 : vector<16x32xf32>
    %c0_5 = arith.constant 0 : index
    %c0_6 = arith.constant 0 : index
    %19 = vector.load %arg2[%c0_5, %c0_6] : memref<1x32xf32, #tpu.memory_space<vmem>>, vector<1x32xf32>
    %20 = vector.broadcast %19 : vector<1x32xf32> to vector<16x32xf32>
    %21 = arith.mulf %18, %20 : vector<16x32xf32>
    %c0_7 = arith.constant 0 : index
    %c0_8 = arith.constant 0 : index
    %22 = vector.load %arg3[%c0_7, %c0_8] : memref<1x32xf32, #tpu.memory_space<vmem>>, vector<1x32xf32>
    %23 = vector.broadcast %22 : vector<1x32xf32> to vector<16x32xf32>
    %24 = arith.addf %21, %23 : vector<16x32xf32>
    %c0_9 = arith.constant 0 : index
    %c0_10 = arith.constant 0 : index
    %25 = vector.load %arg4[%c0_9, %c0_10] : memref<16x32xf32, #tpu.memory_space<vmem>>, vector<16x32xf32>
    tpu.vector_store %arg4[%c0_9, %c0_10], %24 {strides = array<i32>} : memref<16x32xf32, #tpu.memory_space<vmem>>, vector<16x32xf32>,
    return
  }
  func.func @transform_0(%arg0: i32) -> (i32, i32) {
    %c0_i32 = arith.constant 0 : i32
    %c0_i32_0 = arith.constant 0 : i32
    return %arg0, %c0_i32 : i32, i32
  }
  func.func @transform_1(%arg0: i32) -> (i32, i32) {
    %c0_i32 = arith.constant 0 : i32
    %c0_i32_0 = arith.constant 0 : i32
    %c0_i32_1 = arith.constant 0 : i32
    return %c0_i32, %c0_i32_0 : i32, i32
  }
  func.func @transform_2(%arg0: i32) -> (i32, i32) {
    %c0_i32 = arith.constant 0 : i32
    %c0_i32_0 = arith.constant 0 : i32
    %c0_i32_1 = arith.constant 0 : i32
    return %c0_i32, %c0_i32_0 : i32, i32
  }
  func.func @transform_3(%arg0: i32) -> (i32, i32) {
    %c0_i32 = arith.constant 0 : i32
    %c0_i32_0 = arith.constant 0 : i32
    return %arg0, %c0_i32 : i32, i32
  }
}

</mosaic_0001>

<llo_original>
// kernel: tpu_custom_call.1
$region0: #{tpu_custom_call.1}
  #allocation0 [shape = 'u32[]', space=smem, size = 0x4, offset = 0x4, fixed_abs, tag = 'smem constant byte address 0x4 - core index']
  #allocation1 [shape = 'u32[144,128]{1,0:T(1,128)}', space=vmem, size = 0x12000, scoped, tag = 'internal scratch']
  %s0 = inlined_call_operand.hbm [shape: f32[16,32], index: 0, kind: input, shape index: {}]
  %s1 = inlined_call_operand.vmem [shape: f32[1,32], index: 1, kind: input, shape index: {}]
  %s2 = inlined_call_operand.vmem [shape: f32[1,32], index: 2, kind: input, shape index: {}]
  %s3 = inlined_call_operand.hbm [shape: f32[16,32], index: 3, kind: output, shape index: {}]
  %s4 = sld [smem:[#allocation0]]
  $region26: #{tpu_custom_call.1} parent=0
    _
  %s6 = ssub.s32 1, %s4
  %s7 = scalar_select 0, %s6, %s4
  $region1: #{tpu_custom_call.1} parent=0
    #allocation2 [shape = 'u8[8192]{0}', space=vmem, size = 0x2000, scoped, tag = 'input window, operand 0, single buffered']
    #allocation3 [shape = 's32[1]{0}', space=sflag, size = 0x4, scoped, tag = 'scoped memory for tpu_custom_call.1']
    #allocation4 [shape = 's32[1]{0}', space=sflag, size = 0x4, scoped, tag = 'scoped memory for tpu_custom_call.1']
    #allocation5 [shape = 'u8[8192]{0}', space=vmem, size = 0x2000, scoped, tag = 'output window, operand 0, single buffered']
    %8 = vsyncpa [#allocation3], 0
    %9 = vsyncpa [#allocation4], 0
    // Predicated region
    $region2: #{tpu_custom_call.1} parent=1 // pred_check
      _
    $region3: #{tpu_custom_call.1} parent=1 // pred_check_branch
      %11 = sbr.rel (0) target = $region5
    $region4: #{tpu_custom_call.1} parent=1 // pred_region
      %s13 = ssub.s32 256, 256
      %14 = vsyncadd [#allocation3], %s13
      %s15 = sshll.u32 [#allocation2], 4
      %s16 = int_to_ptr.vmem [resolvable:$true] %s15
      %21 = dma.hbm_to_vmem [thread:$0]  %s0, 256, %s16, [#allocation3], 128, 128, 8
    $region5: #{tpu_custom_call.1} parent=1 // pred_fallthru
      _
    // Predicated region
    $region6: #{tpu_custom_call.1} parent=1 // pred_check
      _
    $region7: #{tpu_custom_call.1} parent=1 // pred_check_branch
      %23 = sbr.rel (0) target = $region9
    $region8: #{tpu_custom_call.1} parent=1 // pred_region
      _
    $region9: #{tpu_custom_call.1} parent=1 // pred_fallthru
      _
    // Predicated region
    $region10: #{tpu_custom_call.1} parent=1 // pred_check
      _
    $region11: #{tpu_custom_call.1} parent=1 // pred_check_branch
      %25 = sbr.rel (0) target = $region13
    $region12: #{tpu_custom_call.1} parent=1 // pred_region
      _
    $region13: #{tpu_custom_call.1} parent=1 // pred_fallthru
      _
    // Predicated region
    $region14: #{tpu_custom_call.1} parent=1 // pred_check
      _
    $region15: #{tpu_custom_call.1} parent=1 // pred_check_branch
      %27 = sbr.rel (0) target = $region17
    $region16: #{tpu_custom_call.1} parent=1 // pred_region
      %28 = dma.done [#allocation3], 256
    $region17: #{tpu_custom_call.1} parent=1 // pred_fallthru
      _
    %v29 = vld [vmem:[#allocation2] sm:$0xff]
    %v30 = vld [vmem:[#allocation2 + $0x8] sm:$0xff]
    %vm31 = vcmask 261120
    %v32 = vsel %vm31, %v29, 0.0
    %33 = vadd.xlane.f32.xlu0 %v32
    %v34 = vpop.xlane.xlu0 %33
    %v35 = vsel %vm31, %v30, 0.0
    %36 = vadd.xlane.f32.xlu0 %v35
    %v37 = vpop.xlane.xlu0 %36
    %v38 = vrcp.pop 32.0
    %v39 = vmul.f32 %v34, %v38
    %v40 = vmul.f32 %v37, %v38
    %v41 = vsub.f32 %v29, %v39
    %v42 = vsub.f32 %v30, %v40
    %v43 = vmul.f32 %v41, %v41
    %v44 = vmul.f32 %v42, %v42
    %v45 = vsel %vm31, %v43, 0.0
    %46 = vadd.xlane.f32.xlu0 %v45
    %v47 = vpop.xlane.xlu0 %46
    %v48 = vsel %vm31, %v44, 0.0
    %49 = vadd.xlane.f32.xlu0 %v48
    %v50 = vpop.xlane.xlu0 %49
    %v51 = vmul.f32 %v47, %v38
    %v52 = vmul.f32 %v50, %v38
    %v53 = vadd.f32 %v51, 1e-05
    %v54 = vadd.f32 %v52, 1e-05
    %v55 = vrsqrt.pop %v53
    %v56 = vrsqrt.pop %v54
    %v57 = vmul.f32 %v41, %v55
    %v58 = vmul.f32 %v42, %v56
    %v59 = vld [vmem:[%s1] sm:$0x1]
    %v61 = vlaneseq
    %v62 = vshrl.u32 %v61, 7
    %v63 = vsub.s32 0, %v62
    %v64 = vrot.slane %v59, %v63
    %v66 = vmul.f32 %v57, %v64
    %v67 = vmul.f32 %v58, %v64
    %v68 = vld [vmem:[%s2] sm:$0x1]
    %v70 = vlaneseq
    %v71 = vshrl.u32 %v70, 7
    %v72 = vsub.s32 0, %v71
    %v73 = vrot.slane %v68, %v72
    %v75 = vadd.f32 %v66, %v73
    %v76 = vadd.f32 %v67, %v73
    %77 = vst.msk [vmem:[#allocation5] sm:$0xff] %vm31, %v75
    %78 = vst.msk [vmem:[#allocation5 + $0x8] sm:$0xff] %vm31, %v76
    // Predicated region
    $region18: #{tpu_custom_call.1} parent=1 // pred_check
      _
    $region19: #{tpu_custom_call.1} parent=1 // pred_check_branch
      %80 = sbr.rel (0) target = $region21
    $region20: #{tpu_custom_call.1} parent=1 // pred_region
      %s82 = ssub.s32 256, 256
      %83 = vsyncadd [#allocation4], %s82
      %s84 = sshll.u32 [#allocation5], 4
      %s85 = int_to_ptr.vmem [resolvable:$true] %s84
      %90 = dma.vmem_to_hbm [thread:$0]  %s85, 256, %s3, [#allocation4], 128, 128, 8
    $region21: #{tpu_custom_call.1} parent=1 // pred_fallthru
      _
    // Predicated region
    $region22: #{tpu_custom_call.1} parent=1 // pred_check
      _
    $region23: #{tpu_custom_call.1} parent=1 // pred_check_branch
      %92 = sbr.rel (0) target = $region25
    $region24: #{tpu_custom_call.1} parent=1 // pred_region
      %93 = dma.done [#allocation4], 256
    $region25: #{tpu_custom_call.1} parent=1 // pred_fallthru
      _
    %94 = vsyncpa [#allocation3], 1
    %95 = vsyncpa [#allocation4], 1

</llo_original>
